<compile_context>
chip_gen: v6e
topology: v6e:2x2x1
jax: 0.10.0
libtpu: 0.0.40
codegen_flags: <defaults>
</compile_context>

<pallas_src>
import math
import functools

import jax
import jax.numpy as jnp
from jax import lax
from jax.experimental import pallas as pl
from jax.experimental.pallas import tpu as pltpu


def _pe_add_kernel(off_ref, x_ref, o_ref, *, d_model: int, seq_tile: int):
    """out = x + pe for one (seq_tile, B*D) block.

    Rows are sequence positions; columns are the flattened (batch, feature)
    axis (feature fastest, row-major), so feature index = lane % d_model and
    the encoding is naturally broadcast over batch.
    """
    i = pl.program_id(0)
    blk = x_ref.shape  # (seq_tile, B*D)

    # Absolute sequence position of each row of this block.
    row = lax.broadcasted_iota(jnp.int32, blk, 0)
    pos = (off_ref[0] + i * seq_tile + row).astype(jnp.float32)

    # Feature index per lane; even/odd pairs share the same frequency.
    col = lax.broadcasted_iota(jnp.int32, blk, 1)
    d = col % d_model
    is_even = (d % 2) == 0
    k = (d - (d % 2)).astype(jnp.float32)             # == 2 * (d // 2)
    inv_freq = jnp.exp(k * (-math.log(10000.0) / d_model))   # EUP (idle here)
    angle = pos * inv_freq
    pe = jnp.where(is_even, jnp.sin(angle), jnp.cos(angle))

    # Add in f32, cast back to the activation dtype.
    o_ref[...] = (x_ref[...].astype(jnp.float32) + pe).astype(o_ref.dtype)


def _choose_seq_tile(seq_len: int, row_bytes: int,
                     target_block_bytes: int = 2 << 20) -> int:
    """Largest legal tile (divisor of S, multiple of 8 or full-extent) whose
    (tile, B*D) x-block stays under ~target_block_bytes."""
    max_rows = max(1, target_block_bytes // max(row_bytes, 1))
    divisors = [t for t in range(1, seq_len + 1) if seq_len % t == 0]
    valid = [t for t in divisors if (t % 8 == 0) or (t == seq_len)]
    fitting = [t for t in valid if t <= max_rows]
    if fitting:
        return max(fitting)
    return min(valid)


@jax.jit
def positional_encoding_forward(x: jnp.ndarray, offset: jnp.ndarray):
    """x: (S, B, D) — same layout the PyTorch module assumes; offset: scalar.

    Eval-mode forward: out = x + pe[offset:offset+S]  (dropout == identity).
    """
    S, B, D = x.shape
    itemsize = jnp.dtype(x.dtype).itemsize

    # Lane-dense 2D view: rows = seq (sublane axis), cols = B*D (lane axis).
    # Row-major reshape is a free metadata change.
    x2 = x.reshape(S, B * D)
    seq_tile = _choose_seq_tile(S, B * D * itemsize)
    grid = (S // seq_tile,)

    offset_arr = jnp.reshape(offset, (1,)).astype(jnp.int32)
    kernel = functools.partial(_pe_add_kernel, d_model=D, seq_tile=seq_tile)

    cost = pl.CostEstimate(
        flops=6 * S * B * D,
        transcendentals=2 * S * B * D,
        bytes_accessed=2 * S * B * D * itemsize,      # read x + write out
    )

    out2 = pl.pallas_call(
        kernel,
        out_shape=jax.ShapeDtypeStruct((S, B * D), x.dtype),
        grid_spec=pltpu.PrefetchScalarGridSpec(
            num_scalar_prefetch=1,                    # offset -> SMEM
            grid=grid,
            in_specs=[pl.BlockSpec((seq_tile, B * D), lambda i, off: (i, 0))],
            out_specs=pl.BlockSpec((seq_tile, B * D), lambda i, off: (i, 0)),
        ),
        compiler_params=pltpu.CompilerParams(
            dimension_semantics=("parallel",),        # lets v7x use both TCs
            vmem_limit_bytes=32 << 20,                # safe on v5e/v6e/v7x
        ),
        cost_estimate=cost,
        # NOTE: if the caller does not reuse x, input_output_aliases={1: 0}
        # would make the add in-place; omitted here because __main__ reuses x.
    )(offset_arr, x2)
    return out2.reshape(S, B, D)


def make_positional_encoding(d_model: int, max_len: int = 5000,
                             dtype=jnp.float32) -> jnp.ndarray:
    """Reference pe buffer (max_len, 1, d_model), matching the PyTorch init."""
    position = jnp.arange(0, max_len, dtype=jnp.float32)[:, None]
    div_term = jnp.exp(
        jnp.arange(0, d_model, 2, dtype=jnp.float32)
        * (-math.log(10000.0) / d_model)
    )
    angles = position * div_term
    pe = jnp.zeros((max_len, d_model), dtype=jnp.float32)
    pe = pe.at[:, 0::2].set(jnp.sin(angles))
    pe = pe.at[:, 1::2].set(jnp.cos(angles))
    return pe[:, None, :].astype(dtype)


if __name__ == "__main__":
    # Small, module-consistent shapes: seq=8, batch=2, d_model=32, max_len=64.
    S, B, D = 8, 2, 32
    MAX_LEN = 64
    OFFSET = 3
    assert OFFSET + S <= MAX_LEN, "offset + seq_len exceeds max_len"

    key = jax.random.PRNGKey(0)
    x = jax.random.normal(key, (S, B, D), dtype=jnp.float32)

    out = positional_encoding_forward(x, jnp.int32(OFFSET))
    out = jax.block_until_ready(out)

    # Reference check in plain JAX (eval-mode dropout == identity).
    pe = make_positional_encoding(D, MAX_LEN)
    ref = x + lax.dynamic_slice(pe, (OFFSET, 0, 0), (S, 1, D))
    assert out.shape == (S, B, D)
    assert jnp.allclose(out, ref, atol=1e-4, rtol=1e-4), \
        float(jnp.max(jnp.abs(out - ref)))

    print("KERNEL_OK")
</pallas_src>

<mosaic_0001>
module attributes {stable_mosaic.version = 11 : i64} {
  func.func @_pe_add_kernel(%arg0: i32, %arg1: memref<1xi32, #tpu.memory_space<smem>>, %arg2: memref<8x64xf32, #tpu.memory_space<vmem>>, %arg3: memref<8x64xf32, #tpu.memory_space<vmem>>) attributes {dimension_semantics = [#tpu.dimension_semantics<parallel>], iteration_bounds = array<i64: 1>, scalar_prefetch = 1 : i64, scratch_operands = 0 : i64, tpu.core_type = #tpu.core_type<tc>, window_params = [{transform_indices = @transform_0, window_bounds = array<i64: 8, 64>}, {transform_indices = @transform_1, window_bounds = array<i64: 8, 64>}]} {
    %0 = tpu.iota {dimensions = array<i32: 0>} : vector<8x64xi32>
    %c0 = arith.constant 0 : index
    %1 = memref.load %arg1[%c0] : memref<1xi32, #tpu.memory_space<smem>>
    %c8_i32 = arith.constant 8 : i32
    %2 = arith.muli %arg0, %c8_i32 : i32
    %3 = arith.addi %1, %2 : i32
    %4 = vector.broadcast %3 : i32 to vector<8x64xi32>
    %5 = arith.addi %4, %0 : vector<8x64xi32>
    %6 = arith.sitofp %5 : vector<8x64xi32> to vector<8x64xf32>
    %7 = tpu.iota {dimensions = array<i32: 1>} : vector<8x64xi32>
    %c32_i32 = arith.constant 32 : i32
    %c0_i32 = arith.constant 0 : i32
    %8 = arith.cmpi eq, %c32_i32, %c0_i32 : i32
    %c1_i32 = arith.constant 1 : i32
    %9 = arith.select %8, %c1_i32, %c32_i32 : i32
    %10 = vector.broadcast %9 : i32 to vector<8x64xi32>
    %11 = arith.remsi %7, %10 : vector<8x64xi32>
    %c0_i32_0 = arith.constant 0 : i32
    %12 = vector.broadcast %c0_i32_0 : i32 to vector<8x64xi32>
    %13 = arith.cmpi ne, %11, %12 : vector<8x64xi32>
    %c0_i32_1 = arith.constant 0 : i32
    %14 = vector.broadcast %c0_i32_1 : i32 to vector<8x64xi32>
    %15 = arith.cmpi slt, %11, %14 : vector<8x64xi32>
    %c0_i32_2 = arith.constant 0 : i32
    %16 = arith.cmpi slt, %9, %c0_i32_2 : i32
    %17 = vector.broadcast %16 : i1 to vector<8x64xi1>
    %18 = vector.broadcast %17 : vector<8x64xi1> to vector<8x64xi1>
    %19 = arith.xori %15, %18 : vector<8x64xi1>
    %20 = arith.andi %19, %13 : vector<8x64xi1>
    %21 = vector.broadcast %9 : i32 to vector<8x64xi32>
    %22 = arith.addi %11, %21 : vector<8x64xi32>
    %23 = arith.select %20, %22, %11 : vector<8x64xi1>, vector<8x64xi32>
    %c2_i32 = arith.constant 2 : i32
    %c0_i32_3 = arith.constant 0 : i32
    %24 = arith.cmpi eq, %c2_i32, %c0_i32_3 : i32
    %c1_i32_4 = arith.constant 1 : i32
    %25 = arith.select %24, %c1_i32_4, %c2_i32 : i32
    %26 = vector.broadcast %25 : i32 to vector<8x64xi32>
    %27 = arith.remsi %23, %26 : vector<8x64xi32>
    %c0_i32_5 = arith.constant 0 : i32
    %28 = vector.broadcast %c0_i32_5 : i32 to vector<8x64xi32>
    %29 = arith.cmpi ne, %27, %28 : vector<8x64xi32>
    %c0_i32_6 = arith.constant 0 : i32
    %30 = vector.broadcast %c0_i32_6 : i32 to vector<8x64xi32>
    %31 = arith.cmpi slt, %27, %30 : vector<8x64xi32>
    %c0_i32_7 = arith.constant 0 : i32
    %32 = arith.cmpi slt, %25, %c0_i32_7 : i32
    %33 = vector.broadcast %32 : i1 to vector<8x64xi1>
    %34 = vector.broadcast %33 : vector<8x64xi1> to vector<8x64xi1>
    %35 = arith.xori %31, %34 : vector<8x64xi1>
    %36 = arith.andi %35, %29 : vector<8x64xi1>
    %37 = vector.broadcast %25 : i32 to vector<8x64xi32>
    %38 = arith.addi %27, %37 : vector<8x64xi32>
    %39 = arith.select %36, %38, %27 : vector<8x64xi1>, vector<8x64xi32>
    %c0_i32_8 = arith.constant 0 : i32
    %40 = vector.broadcast %c0_i32_8 : i32 to vector<8x64xi32>
    %41 = arith.cmpi eq, %39, %40 : vector<8x64xi32>
    %c2_i32_9 = arith.constant 2 : i32
    %c0_i32_10 = arith.constant 0 : i32
    %42 = arith.cmpi eq, %c2_i32_9, %c0_i32_10 : i32
    %c1_i32_11 = arith.constant 1 : i32
    %43 = arith.select %42, %c1_i32_11, %c2_i32_9 : i32
    %44 = vector.broadcast %43 : i32 to vector<8x64xi32>
    %45 = arith.remsi %23, %44 : vector<8x64xi32>
    %c0_i32_12 = arith.constant 0 : i32
    %46 = vector.broadcast %c0_i32_12 : i32 to vector<8x64xi32>
    %47 = arith.cmpi ne, %45, %46 : vector<8x64xi32>
    %c0_i32_13 = arith.constant 0 : i32
    %48 = vector.broadcast %c0_i32_13 : i32 to vector<8x64xi32>
    %49 = arith.cmpi slt, %45, %48 : vector<8x64xi32>
    %c0_i32_14 = arith.constant 0 : i32
    %50 = arith.cmpi slt, %43, %c0_i32_14 : i32
    %51 = vector.broadcast %50 : i1 to vector<8x64xi1>
    %52 = vector.broadcast %51 : vector<8x64xi1> to vector<8x64xi1>
    %53 = arith.xori %49, %52 : vector<8x64xi1>
    %54 = arith.andi %53, %47 : vector<8x64xi1>
    %55 = vector.broadcast %43 : i32 to vector<8x64xi32>
    %56 = arith.addi %45, %55 : vector<8x64xi32>
    %57 = arith.select %54, %56, %45 : vector<8x64xi1>, vector<8x64xi32>
    %58 = arith.subi %23, %57 : vector<8x64xi32>
    %59 = arith.sitofp %58 : vector<8x64xi32> to vector<8x64xf32>
    %cst = arith.constant -0.287823141 : f32
    %60 = vector.broadcast %cst : f32 to vector<8x64xf32>
    %61 = arith.mulf %59, %60 : vector<8x64xf32>
    %62 = math.exp %61 : vector<8x64xf32>
    %63 = arith.mulf %6, %62 : vector<8x64xf32>
    %64 = math.sin %63 : vector<8x64xf32>
    %65 = math.cos %63 : vector<8x64xf32>
    %66 = arith.select %41, %64, %65 : vector<8x64xi1>, vector<8x64xf32>
    %c0_15 = arith.constant 0 : index
    %c0_16 = arith.constant 0 : index
    %67 = vector.load %arg2[%c0_15, %c0_16] : memref<8x64xf32, #tpu.memory_space<vmem>>, vector<8x64xf32>
    %68 = arith.addf %67, %66 : vector<8x64xf32>
    %c0_17 = arith.constant 0 : index
    %c0_18 = arith.constant 0 : index
    %69 = vector.load %arg3[%c0_17, %c0_18] : memref<8x64xf32, #tpu.memory_space<vmem>>, vector<8x64xf32>
    tpu.vector_store %arg3[%c0_17, %c0_18], %68 {strides = array<i32>} : memref<8x64xf32, #tpu.memory_space<vmem>>, vector<8x64xf32>,
    return
  }
  func.func @transform_0(%arg0: i32, %arg1: memref<1xi32, #tpu.memory_space<smem>>) -> (i32, i32) {
    %c0_i32 = arith.constant 0 : i32
    %c0_i32_0 = arith.constant 0 : i32
    return %arg0, %c0_i32 : i32, i32
  }
  func.func @transform_1(%arg0: i32, %arg1: memref<1xi32, #tpu.memory_space<smem>>) -> (i32, i32) {
    %c0_i32 = arith.constant 0 : i32
    %c0_i32_0 = arith.constant 0 : i32
    return %arg0, %c0_i32 : i32, i32
  }
}

</mosaic_0001>

<llo_original>
// kernel: positional_encoding_forward.1
$region0: #{positional_encoding_forward.1}
  #allocation0 [shape = 'u32[]', space=smem, size = 0x4, offset = 0x4, fixed_abs, tag = 'smem constant byte address 0x4 - core index']
  #allocation1 [shape = 'u32[144,128]{1,0:T(1,128)}', space=vmem, size = 0x12000, scoped, tag = 'internal scratch']
  #allocation2 [shape = 's32[1]{0}', space=sflag, size = 0x4, scoped, tag = 'scoped memory for positional_encoding_forward.1']
  #allocation3 [shape = 's32[1]{0:T(128)S(6)}', space=smem, size = 0x200, scoped, tag = 'prefetched SMEM operand 0']
  %s0 = inlined_call_operand.<no memory space> [shape: s32[1], index: 0, kind: input, shape index: {}]
  %s1 = inlined_call_operand.vmem [shape: f32[8,64], index: 1, kind: input, shape index: {}]
  %s2 = inlined_call_operand.vmem [shape: f32[8,64], index: 2, kind: output, shape index: {}]
  %s3 = sld [smem:[#allocation0]]
  $region14: #{positional_encoding_forward.1} parent=0
    _
  %s5 = ssub.s32 1, %s3
  %s6 = scalar_select 0, %s5, %s3
  %7 = sst [smem:[#allocation3]] %s0
  // Predicated region
  $region2: #{positional_encoding_forward.1} parent=0 // pred_check
    _
  $region3: #{positional_encoding_forward.1} parent=0 // pred_check_branch
    %9 = sbr.rel (0) target = $region5
  $region4: #{positional_encoding_forward.1} parent=0 // pred_region
    _
  $region5: #{positional_encoding_forward.1} parent=0 // pred_fallthru
    _
  %v10 = vlaneseq
  %v11 = vshrl.u32 %v10, 7
  %s12 = sld [smem:[#allocation3]]
  %s13 = smul.u32 0, 8
  %s14 = sadd.s32 %s12, %s13
  %v15 = vstv %s14
  %v16 = vadd.s32 %v15, %v11
  %v17 = vcvt.s32.f32 %v16
  %v18 = vlaneseq
  %v19 = vand.u32 %v18, 127
  %vm20 = vcmp.lt.s32.totalorder %v19, 0
  %v21 = vsub.s32 0, %v19
  %v22 = vsel %vm20, %v21, %v19
  %v23 = vshrl.u32 %v22, 5
  %v24 = vand.u32 %v22, 31
  %v25 = vsub.s32 0, %v24
  %v26 = vsel %vm20, %v25, %v24
  %vm27 = vcmp.ne.s32.totalorder %v26, 0
  %vm28 = vcmp.lt.s32.totalorder %v26, 0
  %vm29 = vmand %vm28, %vm27
  %v30 = vadd.s32 %v26, 32
  %v31 = vsel %vm29, %v30, %v26
  %vm32 = vcmp.lt.s32.totalorder %v31, 0
  %v33 = vsub.s32 0, %v31
  %v34 = vsel %vm32, %v33, %v31
  %v35 = vshrl.u32 %v34, 1
  %v36 = vand.u32 %v34, 1
  %v37 = vsub.s32 0, %v36
  %v38 = vsel %vm32, %v37, %v36
  %vm39 = vcmp.ne.s32.totalorder %v38, 0
  %vm40 = vcmp.lt.s32.totalorder %v38, 0
  %vm41 = vmand %vm40, %vm39
  %v42 = vadd.s32 %v38, 2
  %v43 = vsel %vm41, %v42, %v38
  %vm44 = vcmp.eq.s32.totalorder %v43, 0
  %v45 = vsub.s32 %v31, %v43
  %v46 = vcvt.s32.f32 %v45
  %v47 = vmul.f32 %v46, -0.28782314
  %v48 = vmul.f32 %v47, 1.442695
  %v49 = vpow.pop %v48
  %v50 = vmul.f32 %v17, %v49
  %v51 = vand.u32 2147483647, %v50
  %vm52 = vcmp.le.f32.partialorder %v51, 0.7853982
  %vm53 = vcmp.lt.s32.totalorder %v50, 0
  %v54 = vand.u32 %v50, 2139095040
  %v55 = vshrl.u32 %v54, 23
  %v56 = vsub.s32 %v55, 127
  %v57 = vand.u32 2147483647, %v50
  %v58 = vand.u32 %v57, 8388607
  %v59 = vor.u32 %v58, 8388608
  %v60 = vsub.s32 0, %v59
  %v61 = vadd.s32 %v56, 1
  %vm62 = vcmp.gt.s32.totalorder %v61, 0
  %v63 = vsel %vm62, %v61, 0
  %v64 = vshrl.u32 %v63, 5
  %v65 = vand.u32 %v63, 31
  %v66 = vsub.s32 32, %v65
  %v67 = vshrl.u32 683565275, %v66
  %v68 = vshll.u32 683565275, %v65
  %v69 = vshrl.u32 2475754826, %v66
  %v70 = vor.u32 %v68, %v69
  %v71 = vshll.u32 2475754826, %v65
  %v72 = vshrl.u32 2131351028, %v66
  %v73 = vor.u32 %v71, %v72
  %v74 = vshll.u32 2131351028, %v65
  %v75 = vshrl.u32 2102212464, %v66
  %v76 = vor.u32 %v74, %v75
  %v77 = vshll.u32 2102212464, %v65
  %v78 = vshrl.u32 920167782, %v66
  %v79 = vor.u32 %v77, %v78
  %v80 = vshll.u32 920167782, %v65
  %v81 = vshrl.u32 1326507024, %v66
  %v82 = vor.u32 %v80, %v81
  %vm83 = vcmp.lt.s32.totalorder %v64, 1
  %vm84 = vcmp.lt.s32.totalorder %v64, 2
  %vm85 = vcmp.lt.s32.totalorder %v64, 3
  %vm86 = vcmp.lt.s32.totalorder %v64, 4
  %v87 = vsel %vm83, %v67, %v70
  %v88 = vsel %vm86, %v76, 2102212464
  %v89 = vsel %vm85, %v73, %v88
  %v90 = vsel %vm84, %v87, %v89
  %v91 = vsel %vm83, %v70, %v73
  %v92 = vsel %vm86, %v79, 920167782
  %v93 = vsel %vm85, %v76, %v92
  %v94 = vsel %vm84, %v91, %v93
  %v95 = vsel %vm83, %v73, %v76
  %v96 = vsel %vm86, %v82, 1326507024
  %v97 = vsel %vm85, %v79, %v96
  %v98 = vsel %vm84, %v95, %v97
  %v99 = vshll.u32 %v59, 8
  %v100 = vmul.u32.u64.compose %v99, %v98
  %v101 = vextract.low.u32 %v100
  %v102 = vextract.high.u32 %v100
  %v103 = vmul.u32.u64.compose %v99, %v94
  %v104 = vextract.low.u32 %v103
  %v105 = vextract.high.u32 %v103
  %v106 = vmul.u32 %v99, %v90
  %v107 = vadd.s32 %v102, %v104
  %vm108 = vc.u32 %v102, %v104
  %v109 = vadd.s32 %v105, 1
  %v110 = vsel %vm108, %v109, %v105
  %v111 = vadd.s32 %v106, %v110
  %v112 = vadd.s32 %v111, 536870912
  %v113 = vshrl.u32 %v112, 30
  %v114 = vshll.u32 %v113, 30
  %v115 = vsub.s32 %v111, %v114
  %vm116 = vcmp.lt.s32.totalorder %v115, 0
  %v117 = vsub.s32 0, %v115
  %v118 = vsel %vm116, %v117, %v115
  %v119 = vclz %v118
  %v120 = vsub.s32 %v119, 2
  %vm121 = vcmp.gt.s32.totalorder 0, %v120
  %v122 = vsel %vm121, 0, %v120
  %v123 = vsub.s32 32, %v122
  %v124 = vshll.u32 %v115, %v122
  %v125 = vshrl.u32 %v107, %v123
  %v126 = vor.u32 %v124, %v125
  %v127 = vsub.s32 4294967266, %v122
  %v128 = vadd.s32 %v127, 127
  %v129 = vshll.u32 %v128, 23
  %v130 = vor.u32 4788187, %v129
  %v131 = vand.u32 2147483647, %v130
  %v133 = vcvt.s32.f32 %v126
  %v134 = vmul.f32 %v133, %v131
  %v135 = vxor.u32 %v134, 2147483648
  %v136 = vsel %vm53, %v135, %v134
  %v137 = vsub.s32 4, %v113
  %v138 = vsel %vm53, %v137, %v113
  %v139 = vsel %vm52, %v50, %v136
  %v140 = vsel %vm52, 0, %v138
  %v141 = vcosq.f32.pop %v139
  %v142 = vsinq.f32.pop %v139
  %vm143 = vweird.f32 %v50
  %v144 = vadd.s32 %v140, 3
  %v145 = vand.u32 %v144, 3
  %vm146 = vcmp.lt.s32.totalorder %v145, 2
  %vm147 = vcmp.eq.s32.totalorder %v145, 0
  %v148 = vxor.u32 %v142, 2147483648
  %v149 = vsel %vm147, %v141, %v148
  %vm150 = vcmp.eq.s32.totalorder %v145, 2
  %v151 = vxor.u32 %v141, 2147483648
  %v152 = vsel %vm150, %v151, %v142
  %v153 = vsel %vm146, %v149, %v152
  %v154 = vsel %vm143, nan, %v153
  %v155 = vand.u32 2147483647, %v50
  %vm156 = vcmp.le.f32.partialorder %v155, 0.7853982
  %vm157 = vcmp.lt.s32.totalorder %v50, 0
  %v158 = vand.u32 %v50, 2139095040
  %v159 = vshrl.u32 %v158, 23
  %v160 = vsub.s32 %v159, 127
  %v161 = vand.u32 2147483647, %v50
  %v162 = vand.u32 %v161, 8388607
  %v163 = vor.u32 %v162, 8388608
  %v164 = vsub.s32 0, %v163
  %v165 = vadd.s32 %v160, 1
  %vm166 = vcmp.gt.s32.totalorder %v165, 0
  %v167 = vsel %vm166, %v165, 0
  %v168 = vshrl.u32 %v167, 5
  %v169 = vand.u32 %v167, 31
  %v170 = vsub.s32 32, %v169
  %v171 = vshrl.u32 683565275, %v170
  %v172 = vshll.u32 683565275, %v169
  %v173 = vshrl.u32 2475754826, %v170
  %v174 = vor.u32 %v172, %v173
  %v175 = vshll.u32 2475754826, %v169
  %v176 = vshrl.u32 2131351028, %v170
  %v177 = vor.u32 %v175, %v176
  %v178 = vshll.u32 2131351028, %v169
  %v179 = vshrl.u32 2102212464, %v170
  %v180 = vor.u32 %v178, %v179
  %v181 = vshll.u32 2102212464, %v169
  %v182 = vshrl.u32 920167782, %v170
  %v183 = vor.u32 %v181, %v182
  %v184 = vshll.u32 920167782, %v169
  %v185 = vshrl.u32 1326507024, %v170
  %v186 = vor.u32 %v184, %v185
  %vm187 = vcmp.lt.s32.totalorder %v168, 1
  %vm188 = vcmp.lt.s32.totalorder %v168, 2
  %vm189 = vcmp.lt.s32.totalorder %v168, 3
  %vm190 = vcmp.lt.s32.totalorder %v168, 4
  %v191 = vsel %vm187, %v171, %v174
  %v192 = vsel %vm190, %v180, 2102212464
  %v193 = vsel %vm189, %v177, %v192
  %v194 = vsel %vm188, %v191, %v193
  %v195 = vsel %vm187, %v174, %v177
  %v196 = vsel %vm190, %v183, 920167782
  %v197 = vsel %vm189, %v180, %v196
  %v198 = vsel %vm188, %v195, %v197
  %v199 = vsel %vm187, %v177, %v180
  %v200 = vsel %vm190, %v186, 1326507024
  %v201 = vsel %vm189, %v183, %v200
  %v202 = vsel %vm188, %v199, %v201
  %v203 = vshll.u32 %v163, 8
  %v204 = vmul.u32.u64.compose %v203, %v202
  %v205 = vextract.low.u32 %v204
  %v206 = vextract.high.u32 %v204
  %v207 = vmul.u32.u64.compose %v203, %v198
  %v208 = vextract.low.u32 %v207
  %v209 = vextract.high.u32 %v207
  %v210 = vmul.u32 %v203, %v194
  %v211 = vadd.s32 %v206, %v208
  %vm212 = vc.u32 %v206, %v208
  %v213 = vadd.s32 %v209, 1
  %v214 = vsel %vm212, %v213, %v209
  %v215 = vadd.s32 %v210, %v214
  %v216 = vadd.s32 %v215, 536870912
  %v217 = vshrl.u32 %v216, 30
  %v218 = vshll.u32 %v217, 30
  %v219 = vsub.s32 %v215, %v218
  %vm220 = vcmp.lt.s32.totalorder %v219, 0
  %v221 = vsub.s32 0, %v219
  %v222 = vsel %vm220, %v221, %v219
  %v223 = vclz %v222
  %v224 = vsub.s32 %v223, 2
  %vm225 = vcmp.gt.s32.totalorder 0, %v224
  %v226 = vsel %vm225, 0, %v224
  %v227 = vsub.s32 32, %v226
  %v228 = vshll.u32 %v219, %v226
  %v229 = vshrl.u32 %v211, %v227
  %v230 = vor.u32 %v228, %v229
  %v231 = vsub.s32 4294967266, %v226
  %v232 = vadd.s32 %v231, 127
  %v233 = vshll.u32 %v232, 23
  %v234 = vor.u32 4788187, %v233
  %v235 = vand.u32 2147483647, %v234
  %v237 = vcvt.s32.f32 %v230
  %v238 = vmul.f32 %v237, %v235
  %v239 = vxor.u32 %v238, 2147483648
  %v240 = vsel %vm157, %v239, %v238
  %v241 = vsub.s32 4, %v217
  %v242 = vsel %vm157, %v241, %v217
  %v243 = vsel %vm156, %v50, %v240
  %v244 = vsel %vm156, 0, %v242
  %v245 = vcosq.f32.pop %v243
  %v246 = vsinq.f32.pop %v243
  %vm247 = vweird.f32 %v50
  %v248 = vand.u32 %v244, 3
  %vm249 = vcmp.lt.s32.totalorder %v248, 2
  %vm250 = vcmp.eq.s32.totalorder %v248, 0
  %v251 = vxor.u32 %v246, 2147483648
  %v252 = vsel %vm250, %v245, %v251
  %vm253 = vcmp.eq.s32.totalorder %v248, 2
  %v254 = vxor.u32 %v245, 2147483648
  %v255 = vsel %vm253, %v254, %v246
  %v256 = vsel %vm249, %v252, %v255
  %v257 = vsel %vm247, nan, %v256
  %v258 = vsel %vm44, %v154, %v257
  %v259 = vld [vmem:[%s1] sm:$0xff]
  %v260 = vadd.f32 %v259, %v258
  %vm261 = vcmask 523264
  %262 = vst.msk [vmem:[%s2] sm:$0xff] %vm261, %v260
  // Predicated region
  $region6: #{positional_encoding_forward.1} parent=0 // pred_check
    _
  $region7: #{positional_encoding_forward.1} parent=0 // pred_check_branch
    %264 = sbr.rel (0) target = $region9
  $region8: #{positional_encoding_forward.1} parent=0 // pred_region
    _
  $region9: #{positional_encoding_forward.1} parent=0 // pred_fallthru
    _
  // Predicated region
  $region10: #{positional_encoding_forward.1} parent=0 // pred_check
    _
  $region11: #{positional_encoding_forward.1} parent=0 // pred_check_branch
    %266 = sbr.rel (0) target = $region13
  $region12: #{positional_encoding_forward.1} parent=0 // pred_region
    _
  $region13: #{positional_encoding_forward.1} parent=0 // pred_fallthru
    _

</llo_original>
